<compile_context>
chip_gen: v5e
topology: v5e:2x2
jax: 0.10.0
libtpu: 0.0.40
codegen_flags: <defaults>
</compile_context>

<pallas_src>
import functools

import jax
import jax.numpy as jnp
from jax import lax
from jax.experimental import pallas as pl
from jax.experimental.pallas import tpu as pltpu

_LANE = 128
_SUBLANE = 8
_DEFAULT_MAX_TILE_ROWS = 4096  # 4096 * 128 * 4B = 2 MiB per f32 input block.


def _round_up(x: int, m: int) -> int:
    return ((x + m - 1) // m) * m


def _smooth_l1_partial_kernel(s_ref, t_ref, o_ref, *, beta: float,
                              tile_rows: int, valid_rows: int, mask_tail: bool):
    s = s_ref[...].astype(jnp.float32)
    t = t_ref[...].astype(jnp.float32)
    d = s - t
    ad = jnp.abs(d)
    if beta > 0.0:
        elem = jnp.where(ad < beta, (0.5 / beta) * d * d, ad - 0.5 * beta)
    else:
        elem = ad
    if mask_tail:
        # Last grid block is partially out-of-bounds: zero the garbage rows.
        row = lax.broadcasted_iota(jnp.int32, (tile_rows, 1), 0)
        global_row = pl.program_id(0) * tile_rows + row
        elem = jnp.where(global_row < valid_rows, elem, 0.0)
    # (tile_rows, 128) -> (tile_rows//8, 8, 128) is a layout no-op; vreg-wise VPU adds
    # reduce the tile to a single (8, 128) partial sum.
    partial = jnp.sum(elem.reshape(tile_rows // _SUBLANE, _SUBLANE, _LANE), axis=0)
    o_ref[...] = partial.reshape(1, _SUBLANE, _LANE)


def feats_kd_smooth_l1(preds_S, preds_T, param_weight: float = 1.0,
                       beta: float = 1.0,
                       max_tile_rows: int = _DEFAULT_MAX_TILE_ROWS):
    """Forward of FeatsKDSmoothL1: SmoothL1Loss(reduction='mean') * param_weight."""
    assert preds_S.shape == preds_T.shape, (preds_S.shape, preds_T.shape)
    n_elems = 1
    for d in preds_S.shape:
        n_elems *= int(d)

    flat_s = preds_S.reshape(-1)
    flat_t = preds_T.reshape(-1)

    # Lane/sublane alignment: rows must be a multiple of 8 so every block satisfies
    # the (8, 128) tiling rule.  Only pads (one copy) when the element count is ragged;
    # zero padding in BOTH inputs contributes exactly 0 to the smooth-L1 sum.
    rows = _round_up(pl.cdiv(n_elems, _LANE), _SUBLANE)
    padded_len = rows * _LANE
    if padded_len != n_elems:
        flat_s = jnp.pad(flat_s, (0, padded_len - n_elems))
        flat_t = jnp.pad(flat_t, (0, padded_len - n_elems))

    s2d = flat_s.reshape(rows, _LANE)
    t2d = flat_t.reshape(rows, _LANE)

    max_tile_rows = max(_SUBLANE, _round_up(int(max_tile_rows), _SUBLANE))
    tile_rows = rows if rows < max_tile_rows else max_tile_rows
    num_tiles = pl.cdiv(rows, tile_rows)
    mask_tail = (rows % tile_rows) != 0  # last block partially out-of-bounds

    kernel = functools.partial(
        _smooth_l1_partial_kernel, beta=float(beta),
        tile_rows=tile_rows, valid_rows=rows, mask_tail=mask_tail)

    itemsize = jnp.dtype(preds_S.dtype).itemsize
    cost = pl.CostEstimate(
        flops=6 * rows * _LANE,
        transcendentals=0,
        bytes_accessed=2 * rows * _LANE * itemsize + num_tiles * _SUBLANE * _LANE * 4,
    )

    partials = pl.pallas_call(
        kernel,
        out_shape=jax.ShapeDtypeStruct((num_tiles, _SUBLANE, _LANE), jnp.float32),
        grid=(num_tiles,),
        in_specs=[
            pl.BlockSpec((tile_rows, _LANE), lambda i: (i, 0)),
            pl.BlockSpec((tile_rows, _LANE), lambda i: (i, 0)),
        ],
        out_specs=pl.BlockSpec((1, _SUBLANE, _LANE), lambda i: (i, 0, 0)),
        compiler_params=pltpu.CompilerParams(
            dimension_semantics=("parallel",)),
        cost_estimate=cost,
    )(s2d, t2d)

    # Tiny final reduction in plain JAX (num_tiles * 4 KiB of f32 partials).
    total = jnp.sum(partials)
    loss = total / jnp.float32(n_elems)  # reduction='mean'
    return loss * jnp.float32(param_weight)


def _ref_smooth_l1_mean(s, t, beta: float = 1.0):
    d = s.astype(jnp.float32) - t.astype(jnp.float32)
    ad = jnp.abs(d)
    elem = jnp.where(ad < beta, 0.5 * d * d / beta, ad - 0.5 * beta)
    return jnp.mean(elem)


if __name__ == "__main__":
    key = jax.random.PRNGKey(0)
    k1, k2, k3, k4, k5, k6 = jax.random.split(key, 6)

    # 1) Default config, f32 NCHW feature maps (batch=2, channels=4, spatial=16).
    preds_S = jax.random.normal(k1, (2, 4, 16, 16), dtype=jnp.float32)
    preds_T = jax.random.normal(k2, (2, 4, 16, 16), dtype=jnp.float32)
    loss = feats_kd_smooth_l1(preds_S, preds_T, param_weight=1.0)
    jax.block_until_ready(loss)
    ref = _ref_smooth_l1_mean(preds_S, preds_T)
    assert jnp.allclose(loss, ref, rtol=1e-5, atol=1e-5), (loss, ref)

    # 2) bf16 inputs, non-128-multiple element count (exercises zero-pad path),
    #    param_weight != 1.
    preds_Sb = jax.random.normal(k3, (2, 3, 7, 11), dtype=jnp.bfloat16)
    preds_Tb = jax.random.normal(k4, (2, 3, 7, 11), dtype=jnp.bfloat16)
    loss_b = feats_kd_smooth_l1(preds_Sb, preds_Tb, param_weight=2.0)
    jax.block_until_ready(loss_b)
    ref_b = _ref_smooth_l1_mean(preds_Sb, preds_Tb) * 2.0
    assert jnp.allclose(loss_b, ref_b, rtol=1e-4, atol=1e-4), (loss_b, ref_b)

    # 3) Row count not a multiple of the tile (exercises partial last block + mask).
    preds_Sc = jax.random.normal(k5, (2, 3, 4, 128), dtype=jnp.float32)  # 24 rows
    preds_Tc = jax.random.normal(k6, (2, 3, 4, 128), dtype=jnp.float32)
    loss_c = feats_kd_smooth_l1(preds_Sc, preds_Tc, param_weight=0.5,
                                max_tile_rows=16)  # grid=2, last block partial
    jax.block_until_ready(loss_c)
    ref_c = _ref_smooth_l1_mean(preds_Sc, preds_Tc) * 0.5
    assert jnp.allclose(loss_c, ref_c, rtol=1e-5, atol=1e-5), (loss_c, ref_c)

    print("KERNEL_OK")
</pallas_src>

<mosaic_0001>
module attributes {stable_mosaic.version = 11 : i64} {
  func.func @_smooth_l1_partial_kernel(%arg0: i32, %arg1: memref<16x128xf32, #tpu.memory_space<vmem>>, %arg2: memref<16x128xf32, #tpu.memory_space<vmem>>, %arg3: memref<1x8x128xf32, #tpu.memory_space<vmem>>) attributes {dimension_semantics = [#tpu.dimension_semantics<parallel>], iteration_bounds = array<i64: 1>, scalar_prefetch = 0 : i64, scratch_operands = 0 : i64, tpu.core_type = #tpu.core_type<tc>, window_params = [{transform_indices = @transform_0, window_bounds = array<i64: 16, 128>}, {transform_indices = @transform_1, window_bounds = array<i64: 16, 128>}, {transform_indices = @transform_2, window_bounds = array<i64: 1, 8, 128>}]} {
    %c0 = arith.constant 0 : index
    %c0_0 = arith.constant 0 : index
    %0 = vector.load %arg1[%c0, %c0_0] : memref<16x128xf32, #tpu.memory_space<vmem>>, vector<16x128xf32>
    %c0_1 = arith.constant 0 : index
    %c0_2 = arith.constant 0 : index
    %1 = vector.load %arg2[%c0_1, %c0_2] : memref<16x128xf32, #tpu.memory_space<vmem>>, vector<16x128xf32>
    %2 = arith.subf %0, %1 : vector<16x128xf32>
    %3 = math.absf %2 : vector<16x128xf32>
    %cst = arith.constant 1.000000e+00 : f32
    %4 = vector.broadcast %cst : f32 to vector<16x128xf32>
    %5 = arith.cmpf olt, %3, %4 : vector<16x128xf32>
    %cst_3 = arith.constant 5.000000e-01 : f32
    %6 = vector.broadcast %cst_3 : f32 to vector<16x128xf32>
    %7 = arith.mulf %6, %2 : vector<16x128xf32>
    %8 = arith.mulf %7, %2 : vector<16x128xf32>
    %cst_4 = arith.constant 5.000000e-01 : f32
    %9 = vector.broadcast %cst_4 : f32 to vector<16x128xf32>
    %10 = arith.subf %3, %9 : vector<16x128xf32>
    %11 = arith.select %5, %8, %10 : vector<16x128xi1>, vector<16x128xf32>
    %12 = vector.shape_cast %11 : vector<16x128xf32> to vector<2x8x128xf32>
    %cst_5 = arith.constant dense<0.000000e+00> : vector<8x128xf32>
    %13 = vector.multi_reduction <add>, %12, %cst_5 [0] : vector<2x8x128xf32> to vector<8x128xf32>
    %14 = vector.shape_cast %13 : vector<8x128xf32> to vector<1x8x128xf32>
    %c0_6 = arith.constant 0 : index
    %c0_7 = arith.constant 0 : index
    %c0_8 = arith.constant 0 : index
    %15 = vector.load %arg3[%c0_6, %c0_7, %c0_8] : memref<1x8x128xf32, #tpu.memory_space<vmem>>, vector<1x8x128xf32>
    tpu.vector_store %arg3[%c0_6, %c0_7, %c0_8], %14 {strides = array<i32>} : memref<1x8x128xf32, #tpu.memory_space<vmem>>, vector<1x8x128xf32>,
    return
  }
  func.func @transform_0(%arg0: i32) -> (i32, i32) {
    %c0_i32 = arith.constant 0 : i32
    %c0_i32_0 = arith.constant 0 : i32
    return %arg0, %c0_i32 : i32, i32
  }
  func.func @transform_1(%arg0: i32) -> (i32, i32) {
    %c0_i32 = arith.constant 0 : i32
    %c0_i32_0 = arith.constant 0 : i32
    return %arg0, %c0_i32 : i32, i32
  }
  func.func @transform_2(%arg0: i32) -> (i32, i32, i32) {
    %c0_i32 = arith.constant 0 : i32
    %c0_i32_0 = arith.constant 0 : i32
    %c0_i32_1 = arith.constant 0 : i32
    return %arg0, %c0_i32, %c0_i32_0 : i32, i32, i32
  }
}

</mosaic_0001>

<llo_original>
// kernel: tpu_custom_call.1
$region0: #{tpu_custom_call.1}
  #allocation0 [shape = 'u32[]', space=smem, size = 0x4, offset = 0x4, fixed_abs, tag = 'smem constant byte address 0x4 - core index']
  #allocation1 [shape = 'u32[72,128]{1,0:T(1,128)}', space=vmem, size = 0x9000, scoped, tag = 'internal scratch']
  %s0 = inlined_call_operand.hbm [shape: f32[16,128], index: 0, kind: input, shape index: {}]
  %s1 = inlined_call_operand.hbm [shape: f32[16,128], index: 1, kind: input, shape index: {}]
  %s2 = inlined_call_operand.hbm [shape: f32[1,8,128], index: 2, kind: output, shape index: {}]
  %s3 = sld [smem:[#allocation0]]
  $region26: #{tpu_custom_call.1} parent=0
    _
  %s5 = ssub.s32 1, %s3
  %s6 = scalar_select 0, %s5, %s3
  $region1: #{tpu_custom_call.1} parent=0
    #allocation2 [shape = 'u8[8192]{0}', space=vmem, size = 0x2000, scoped, tag = 'input window, operand 0, single buffered']
    #allocation3 [shape = 's32[1]{0}', space=sflag, size = 0x4, scoped, tag = 'scoped memory for tpu_custom_call.1']
    #allocation4 [shape = 's32[1]{0}', space=sflag, size = 0x4, scoped, tag = 'scoped memory for tpu_custom_call.1']
    #allocation5 [shape = 'u8[8192]{0}', space=vmem, size = 0x2000, scoped, tag = 'input window, operand 1, single buffered']
    #allocation6 [shape = 's32[1]{0}', space=sflag, size = 0x4, scoped, tag = 'scoped memory for tpu_custom_call.1']
    #allocation7 [shape = 'u8[4096]{0}', space=vmem, size = 0x1000, scoped, tag = 'output window, operand 0, single buffered']
    %7 = vsyncpa [#allocation3], 0
    %8 = vsyncpa [#allocation6], 0
    %9 = vsyncpa [#allocation4], 0
    // Predicated region
    $region2: #{tpu_custom_call.1} parent=1 // pred_check
      _
    $region3: #{tpu_custom_call.1} parent=1 // pred_check_branch
      %11 = sbr.rel (0) target = $region5
    $region4: #{tpu_custom_call.1} parent=1 // pred_region
      %13 = vsyncadd [#allocation3], 0
      %s14 = sshll.u32 %s0, 4
      %s15 = int_to_ptr.hbm [resolvable:$true] %s14
      %s16 = sshll.u32 [#allocation2], 4
      %s17 = int_to_ptr.vmem [resolvable:$true] %s16
      %22 = dma.hbm_to_vmem [thread:$0]  %s15, 256, %s17, [#allocation3], 128, 128, 8
    $region5: #{tpu_custom_call.1} parent=1 // pred_fallthru
      _
    // Predicated region
    $region6: #{tpu_custom_call.1} parent=1 // pred_check
      _
    $region7: #{tpu_custom_call.1} parent=1 // pred_check_branch
      %24 = sbr.rel (0) target = $region9
    $region8: #{tpu_custom_call.1} parent=1 // pred_region
      %26 = vsyncadd [#allocation6], 0
      %s27 = sshll.u32 %s1, 4
      %s28 = int_to_ptr.hbm [resolvable:$true] %s27
      %s29 = sshll.u32 [#allocation5], 4
      %s30 = int_to_ptr.vmem [resolvable:$true] %s29
      %35 = dma.hbm_to_vmem [thread:$0]  %s28, 256, %s30, [#allocation6], 128, 128, 8
    $region9: #{tpu_custom_call.1} parent=1 // pred_fallthru
      _
    // Predicated region
    $region10: #{tpu_custom_call.1} parent=1 // pred_check
      _
    $region11: #{tpu_custom_call.1} parent=1 // pred_check_branch
      %37 = sbr.rel (0) target = $region13
    $region12: #{tpu_custom_call.1} parent=1 // pred_region
      %39 = dma.done [#allocation3], 256
    $region13: #{tpu_custom_call.1} parent=1 // pred_fallthru
      _
    // Predicated region
    $region14: #{tpu_custom_call.1} parent=1 // pred_check
      _
    $region15: #{tpu_custom_call.1} parent=1 // pred_check_branch
      %41 = sbr.rel (0) target = $region17
    $region16: #{tpu_custom_call.1} parent=1 // pred_region
      %43 = dma.done [#allocation6], 256
    $region17: #{tpu_custom_call.1} parent=1 // pred_fallthru
      _
    %v44 = vld [vmem:[#allocation2] sm:$0xff]
    %v45 = vld [vmem:[#allocation2 + $0x8] sm:$0xff]
    %v46 = vld [vmem:[#allocation5] sm:$0xff]
    %v47 = vld [vmem:[#allocation5 + $0x8] sm:$0xff]
    %v48 = vsub.f32 %v44, %v46
    %v49 = vsub.f32 %v45, %v47
    %v50 = vand.u32 2147483647, %v48
    %v51 = vand.u32 2147483647, %v49
    %vm52 = vcmp.lt.f32.partialorder %v50, 1.0
    %vm53 = vcmp.lt.f32.partialorder %v51, 1.0
    %v54 = vmul.f32 %v48, 0.5
    %v55 = vmul.f32 %v49, 0.5
    %v56 = vmul.f32 %v54, %v48
    %v57 = vmul.f32 %v55, %v49
    %v58 = vsub.f32 %v50, 0.5
    %v59 = vsub.f32 %v51, 0.5
    %v60 = vsel %vm52, %v56, %v58
    %v61 = vsel %vm53, %v57, %v59
    %v62 = vadd.f32 %v60, %v61
    %63 = vst [vmem:[#allocation7] sm:$0xff] %v62
    // Predicated region
    $region18: #{tpu_custom_call.1} parent=1 // pred_check
      _
    $region19: #{tpu_custom_call.1} parent=1 // pred_check_branch
      %65 = sbr.rel (0) target = $region21
    $region20: #{tpu_custom_call.1} parent=1 // pred_region
      %67 = vsyncadd [#allocation4], 0
      %s69 = sshll.u32 [#allocation7], 4
      %s70 = int_to_ptr.vmem [resolvable:$true] %s69
      %s71 = sshll.u32 %s2, 4
      %s72 = int_to_ptr.hbm [resolvable:$true] %s71
      %74 = dma.vmem_to_hbm [thread:$0]  %s70, 128, %s72, [#allocation4]
    $region21: #{tpu_custom_call.1} parent=1 // pred_fallthru
      _
    // Predicated region
    $region22: #{tpu_custom_call.1} parent=1 // pred_check
      _
    $region23: #{tpu_custom_call.1} parent=1 // pred_check_branch
      %76 = sbr.rel (0) target = $region25
    $region24: #{tpu_custom_call.1} parent=1 // pred_region
      %78 = dma.done [#allocation4], 128
    $region25: #{tpu_custom_call.1} parent=1 // pred_fallthru
      _
    %79 = vsyncpa [#allocation3], 1
    %80 = vsyncpa [#allocation6], 1
    %81 = vsyncpa [#allocation4], 1

</llo_original>
